<compile_context>
chip_gen: v7x
topology: tpu7x:2x2x1
jax: 0.10.0
libtpu: 0.0.40
codegen_flags: <defaults>
</compile_context>

<pallas_src>
import functools

import jax
import jax.numpy as jnp
from jax.experimental import pallas as pl
from jax.experimental.pallas import tpu as pltpu


def soft_q_kernel(x_ref, a_ref, w1x_ref, w1a_ref, b1_ref, w2_ref, b2_ref,
                  w3_ref, b3_ref, out_ref):
    """One batch tile: two MXU matmuls (bf16 in, f32 acc) + VPU head."""
    x = x_ref[...].astype(jnp.bfloat16)                                   # (TB, obs)
    a = a_ref[...].astype(jnp.bfloat16)                                   # (TB, act)

    # fc1: split-weight form of cat([x, a]) @ W1
    h1 = jnp.dot(x, w1x_ref[...], preferred_element_type=jnp.float32)
    h1 = h1 + jnp.dot(a, w1a_ref[...], preferred_element_type=jnp.float32)
    h1 = jnp.maximum(h1 + b1_ref[...], 0.0)                               # (TB, 256) f32

    # fc2
    h2 = jnp.dot(h1.astype(jnp.bfloat16), w2_ref[...],
                 preferred_element_type=jnp.float32)
    h2 = jnp.maximum(h2 + b2_ref[...], 0.0)                               # (TB, 256) f32

    # fc3 (256 -> 1): VPU multiply + lane reduction instead of a 1-lane matmul.
    w3_row = w3_ref[...].astype(jnp.float32)                              # (1, 256)
    q = jnp.sum(h2 * w3_row, axis=-1, keepdims=True) + b3_ref[0, 0]       # (TB, 1)
    out_ref[...] = q.astype(out_ref.dtype)


@functools.partial(jax.jit, static_argnames=("tb",))
def soft_q_forward(x, a, params, tb=512):
    """x: (B, obs_dim) f32, a: (B, act_dim) f32 -> (B, 1) f32."""
    w1x, w1a, b1, w2, b2, w3, b3 = params
    B, obs_dim = x.shape
    act_dim = a.shape[1]
    hidden = w2.shape[0]

    # Batch tile: multiple of 8 sublanes, <= tb; pad batch to a tile multiple.
    rb = ((B + 7) // 8) * 8
    TB = min(tb, rb)
    B_pad = pl.cdiv(B, TB) * TB
    if B_pad != B:
        x = jnp.pad(x, ((0, B_pad - B), (0, 0)))
        a = jnp.pad(a, ((0, B_pad - B), (0, 0)))

    grid = (B_pad // TB,)

    act_spec = lambda d: pl.BlockSpec((TB, d), lambda i: (i, 0))
    res_spec = lambda shape: pl.BlockSpec(shape, lambda i: (0, 0))   # VMEM-resident

    out = pl.pallas_call(
        soft_q_kernel,
        out_shape=jax.ShapeDtypeStruct((B_pad, 1), jnp.float32),
        grid=grid,
        in_specs=[
            act_spec(obs_dim),                       # x tile
            act_spec(act_dim),                       # a tile
            res_spec((obs_dim, hidden)),             # W1_obs  (bf16)
            res_spec((act_dim, hidden)),             # W1_act  (bf16)
            res_spec((1, hidden)),                   # b1      (f32)
            res_spec((hidden, hidden)),              # W2      (bf16)
            res_spec((1, hidden)),                   # b2      (f32)
            res_spec((1, hidden)),                   # W3 row  (bf16)
            pl.BlockSpec(memory_space=pltpu.MemorySpace.SMEM),  # b3 scalar
        ],
        out_specs=pl.BlockSpec((TB, 1), lambda i: (i, 0)),
        compiler_params=pltpu.CompilerParams(
            dimension_semantics=("parallel",)),
    )(x, a, w1x, w1a, b1, w2, b2, w3, b3)

    return out[:B]


def init_params(key, obs_dim, act_dim, hidden=256):
    """Mimics nn.Linear U(-1/sqrt(fan_in), 1/sqrt(fan_in)) init.

    Weights are (in_features, out_features) and stored in bf16; fc1's weight is
    pre-split along its input rows into the obs part and the act part. Biases
    stay f32; b3 is a (1, 1) f32 SMEM scalar.
    """
    d_in = obs_dim + act_dim
    k = jax.random.split(key, 6)

    def u(kk, shape, fan_in, dtype):
        bound = 1.0 / jnp.sqrt(jnp.float32(fan_in))
        return jax.random.uniform(kk, shape, jnp.float32, -bound, bound).astype(dtype)

    w1 = u(k[0], (d_in, hidden), d_in, jnp.bfloat16)
    w1x, w1a = w1[:obs_dim], w1[obs_dim:]
    b1 = u(k[1], (1, hidden), d_in, jnp.float32)
    w2 = u(k[2], (hidden, hidden), hidden, jnp.bfloat16)
    b2 = u(k[3], (1, hidden), hidden, jnp.float32)
    w3 = u(k[4], (1, hidden), hidden, jnp.bfloat16)   # stored as a row
    b3 = u(k[5], (1, 1), hidden, jnp.float32)
    return (w1x, w1a, b1, w2, b2, w3, b3)


def reference_forward(x, a, params):
    """Pure-JAX reference mirroring the kernel's bf16-weight / f32-acc math."""
    w1x, w1a, b1, w2, b2, w3, b3 = params
    h1 = jnp.dot(x.astype(jnp.bfloat16), w1x, preferred_element_type=jnp.float32)
    h1 = h1 + jnp.dot(a.astype(jnp.bfloat16), w1a, preferred_element_type=jnp.float32)
    h1 = jnp.maximum(h1 + b1, 0.0)
    h2 = jnp.dot(h1.astype(jnp.bfloat16), w2, preferred_element_type=jnp.float32)
    h2 = jnp.maximum(h2 + b2, 0.0)
    return jnp.sum(h2 * w3.astype(jnp.float32), axis=-1, keepdims=True) + b3


if __name__ == "__main__":
    key = jax.random.PRNGKey(0)
    kx, ka, kp, kx2, ka2 = jax.random.split(key, 5)

    obs_dim, act_dim = 16, 8
    params = init_params(kp, obs_dim, act_dim)

    # Small batch (single tile, padded to 8 rows).
    batch = 2
    x = jax.random.normal(kx, (batch, obs_dim), jnp.float32)
    a = jax.random.normal(ka, (batch, act_dim), jnp.float32)
    out = jax.block_until_ready(soft_q_forward(x, a, params))
    ref = reference_forward(x, a, params)
    assert out.shape == (batch, 1), out.shape
    assert jnp.allclose(out, ref, atol=1e-3, rtol=1e-3), (out, ref)

    # Larger batch: exercises the batch grid (>1 tile) and padding path.
    batch2 = 640
    x2 = jax.random.normal(kx2, (batch2, obs_dim), jnp.float32)
    a2 = jax.random.normal(ka2, (batch2, act_dim), jnp.float32)
    out2 = jax.block_until_ready(soft_q_forward(x2, a2, params))
    ref2 = reference_forward(x2, a2, params)
    assert out2.shape == (batch2, 1), out2.shape
    assert jnp.allclose(out2, ref2, atol=1e-3, rtol=1e-3)

    print("KERNEL_OK")
</pallas_src>

<mosaic_0001>
module attributes {stable_mosaic.version = 11 : i64} {
  func.func @soft_q_kernel(%arg0: i32, %arg1: memref<8x16xf32, #tpu.memory_space<vmem>>, %arg2: memref<8x8xf32, #tpu.memory_space<vmem>>, %arg3: memref<16x256xbf16, #tpu.memory_space<vmem>>, %arg4: memref<8x256xbf16, #tpu.memory_space<vmem>>, %arg5: memref<1x256xf32, #tpu.memory_space<vmem>>, %arg6: memref<256x256xbf16, #tpu.memory_space<vmem>>, %arg7: memref<1x256xf32, #tpu.memory_space<vmem>>, %arg8: memref<1x256xbf16, #tpu.memory_space<vmem>>, %arg9: memref<1x1xf32, #tpu.memory_space<smem>>, %arg10: memref<8x1xf32, #tpu.memory_space<vmem>>) attributes {dimension_semantics = [#tpu.dimension_semantics<parallel>], iteration_bounds = array<i64: 1>, scalar_prefetch = 0 : i64, scratch_operands = 0 : i64, tpu.core_type = #tpu.core_type<tc>, window_params = [{transform_indices = @transform_0, window_bounds = array<i64: 8, 16>}, {transform_indices = @transform_1, window_bounds = array<i64: 8, 8>}, {pipeline_mode = #tpu.pipeline_mode<synchronous>, transform_indices = @transform_2, window_bounds = array<i64: 16, 256>}, {pipeline_mode = #tpu.pipeline_mode<synchronous>, transform_indices = @transform_3, window_bounds = array<i64: 8, 256>}, {pipeline_mode = #tpu.pipeline_mode<synchronous>, transform_indices = @transform_4, window_bounds = array<i64: 1, 256>}, {pipeline_mode = #tpu.pipeline_mode<synchronous>, transform_indices = @transform_5, window_bounds = array<i64: 256, 256>}, {pipeline_mode = #tpu.pipeline_mode<synchronous>, transform_indices = @transform_6, window_bounds = array<i64: 1, 256>}, {pipeline_mode = #tpu.pipeline_mode<synchronous>, transform_indices = @transform_7, window_bounds = array<i64: 1, 256>}, {transform_indices = @transform_8, window_bounds = array<i64: 1, 1>}, {transform_indices = @transform_9, window_bounds = array<i64: 8, 1>}]} {
    %c0 = arith.constant 0 : index
    %c0_0 = arith.constant 0 : index
    %0 = vector.load %arg1[%c0, %c0_0] : memref<8x16xf32, #tpu.memory_space<vmem>>, vector<8x16xf32>
    %1 = arith.truncf %0 : vector<8x16xf32> to vector<8x16xbf16>
    %c0_1 = arith.constant 0 : index
    %c0_2 = arith.constant 0 : index
    %2 = vector.load %arg2[%c0_1, %c0_2] : memref<8x8xf32, #tpu.memory_space<vmem>>, vector<8x8xf32>
    %3 = arith.truncf %2 : vector<8x8xf32> to vector<8x8xbf16>
    %c0_3 = arith.constant 0 : index
    %c0_4 = arith.constant 0 : index
    %4 = vector.load %arg3[%c0_3, %c0_4] : memref<16x256xbf16, #tpu.memory_space<vmem>>, vector<16x256xbf16>
    %cst = arith.constant dense<0.000000e+00> : vector<8x256xf32>
    %5 = tpu.matmul %1, %4, %cst {dimension_numbers = #tpu.dot_dimension_numbers<[1], [0], [0], [1], [0, 0, 1, 1], [], []>} : vector<8x16xbf16>, vector<16x256xbf16>, vector<8x256xf32> -> vector<8x256xf32>
    %c0_5 = arith.constant 0 : index
    %c0_6 = arith.constant 0 : index
    %6 = vector.load %arg4[%c0_5, %c0_6] : memref<8x256xbf16, #tpu.memory_space<vmem>>, vector<8x256xbf16>
    %cst_7 = arith.constant dense<0.000000e+00> : vector<8x256xf32>
    %7 = tpu.matmul %3, %6, %cst_7 {dimension_numbers = #tpu.dot_dimension_numbers<[1], [0], [0], [1], [0, 0, 1, 1], [], []>} : vector<8x8xbf16>, vector<8x256xbf16>, vector<8x256xf32> -> vector<8x256xf32>
    %8 = arith.addf %5, %7 : vector<8x256xf32>
    %c0_8 = arith.constant 0 : index
    %c0_9 = arith.constant 0 : index
    %9 = vector.load %arg5[%c0_8, %c0_9] : memref<1x256xf32, #tpu.memory_space<vmem>>, vector<1x256xf32>
    %10 = vector.broadcast %9 : vector<1x256xf32> to vector<8x256xf32>
    %11 = arith.addf %8, %10 : vector<8x256xf32>
    %cst_10 = arith.constant 0.000000e+00 : f32
    %12 = vector.broadcast %cst_10 : f32 to vector<8x256xf32>
    %13 = arith.maximumf %11, %12 : vector<8x256xf32>
    %14 = arith.truncf %13 : vector<8x256xf32> to vector<8x256xbf16>
    %c0_11 = arith.constant 0 : index
    %c0_12 = arith.constant 0 : index
    %15 = vector.load %arg6[%c0_11, %c0_12] : memref<256x256xbf16, #tpu.memory_space<vmem>>, vector<256x256xbf16>
    %cst_13 = arith.constant dense<0.000000e+00> : vector<8x256xf32>
    %16 = tpu.matmul %14, %15, %cst_13 {dimension_numbers = #tpu.dot_dimension_numbers<[1], [0], [0], [1], [0, 0, 1, 1], [], []>} : vector<8x256xbf16>, vector<256x256xbf16>, vector<8x256xf32> -> vector<8x256xf32>
    %c0_14 = arith.constant 0 : index
    %c0_15 = arith.constant 0 : index
    %17 = vector.load %arg7[%c0_14, %c0_15] : memref<1x256xf32, #tpu.memory_space<vmem>>, vector<1x256xf32>
    %18 = vector.broadcast %17 : vector<1x256xf32> to vector<8x256xf32>
    %19 = arith.addf %16, %18 : vector<8x256xf32>
    %cst_16 = arith.constant 0.000000e+00 : f32
    %20 = vector.broadcast %cst_16 : f32 to vector<8x256xf32>
    %21 = arith.maximumf %19, %20 : vector<8x256xf32>
    %c0_17 = arith.constant 0 : index
    %c0_18 = arith.constant 0 : index
    %22 = vector.load %arg8[%c0_17, %c0_18] : memref<1x256xbf16, #tpu.memory_space<vmem>>, vector<1x256xbf16>
    %23 = arith.extf %22 : vector<1x256xbf16> to vector<1x256xf32>
    %24 = vector.broadcast %23 : vector<1x256xf32> to vector<8x256xf32>
    %25 = arith.mulf %21, %24 : vector<8x256xf32>
    %cst_19 = arith.constant dense<0.000000e+00> : vector<8xf32>
    %26 = vector.multi_reduction <add>, %25, %cst_19 [1] : vector<8x256xf32> to vector<8xf32>
    %27 = vector.shape_cast %26 : vector<8xf32> to vector<8x1xf32>
    %c0_20 = arith.constant 0 : index
    %c0_21 = arith.constant 0 : index
    %28 = memref.load %arg9[%c0_20, %c0_21] : memref<1x1xf32, #tpu.memory_space<smem>>
    %29 = vector.broadcast %28 : f32 to vector<8x1xf32>
    %30 = arith.addf %27, %29 : vector<8x1xf32>
    %c0_22 = arith.constant 0 : index
    %c0_23 = arith.constant 0 : index
    %31 = vector.load %arg10[%c0_22, %c0_23] : memref<8x1xf32, #tpu.memory_space<vmem>>, vector<8x1xf32>
    tpu.vector_store %arg10[%c0_22, %c0_23], %30 {strides = array<i32>} : memref<8x1xf32, #tpu.memory_space<vmem>>, vector<8x1xf32>,
    return
  }
  func.func @transform_0(%arg0: i32) -> (i32, i32) {
    %c0_i32 = arith.constant 0 : i32
    %c0_i32_0 = arith.constant 0 : i32
    return %arg0, %c0_i32 : i32, i32
  }
  func.func @transform_1(%arg0: i32) -> (i32, i32) {
    %c0_i32 = arith.constant 0 : i32
    %c0_i32_0 = arith.constant 0 : i32
    return %arg0, %c0_i32 : i32, i32
  }
  func.func @transform_2(%arg0: i32) -> (i32, i32) {
    %c0_i32 = arith.constant 0 : i32
    %c0_i32_0 = arith.constant 0 : i32
    %c0_i32_1 = arith.constant 0 : i32
    return %c0_i32, %c0_i32_0 : i32, i32
  }
  func.func @transform_3(%arg0: i32) -> (i32, i32) {
    %c0_i32 = arith.constant 0 : i32
    %c0_i32_0 = arith.constant 0 : i32
    %c0_i32_1 = arith.constant 0 : i32
    return %c0_i32, %c0_i32_0 : i32, i32
  }
  func.func @transform_4(%arg0: i32) -> (i32, i32) {
    %c0_i32 = arith.constant 0 : i32
    %c0_i32_0 = arith.constant 0 : i32
    %c0_i32_1 = arith.constant 0 : i32
    return %c0_i32, %c0_i32_0 : i32, i32
  }
  func.func @transform_5(%arg0: i32) -> (i32, i32) {
    %c0_i32 = arith.constant 0 : i32
    %c0_i32_0 = arith.constant 0 : i32
    %c0_i32_1 = arith.constant 0 : i32
    return %c0_i32, %c0_i32_0 : i32, i32
  }
  func.func @transform_6(%arg0: i32) -> (i32, i32) {
    %c0_i32 = arith.constant 0 : i32
    %c0_i32_0 = arith.constant 0 : i32
    %c0_i32_1 = arith.constant 0 : i32
    return %c0_i32, %c0_i32_0 : i32, i32
  }
  func.func @transform_7(%arg0: i32) -> (i32, i32) {
    %c0_i32 = arith.constant 0 : i32
    %c0_i32_0 = arith.constant 0 : i32
    %c0_i32_1 = arith.constant 0 : i32
    return %c0_i32, %c0_i32_0 : i32, i32
  }
  func.func @transform_8(%arg0: i32) -> (i32, i32) {
    %c0_i32 = arith.constant 0 : i32
    %c0_i32_0 = arith.constant 0 : i32
    %c0_i32_1 = arith.constant 0 : i32
    return %c0_i32, %c0_i32_0 : i32, i32
  }
  func.func @transform_9(%arg0: i32) -> (i32, i32) {
    %c0_i32 = arith.constant 0 : i32
    %c0_i32_0 = arith.constant 0 : i32
    return %arg0, %c0_i32 : i32, i32
  }
}

</mosaic_0001>

<llo_original>
// kernel: soft_q_forward.1
$region0: #{soft_q_forward.1}
  #allocation0 [shape = 'u32[]', space=smem, size = 0x4, offset = 0x4, fixed_abs, tag = 'smem constant byte address 0x4 - core index']
  #allocation1 [shape = 'u32[144,128]{1,0:T(1,128)}', space=vmem, size = 0x12000, scoped, tag = 'internal scratch']
  #allocation2 [shape = 'f32[1,1]{1,0:T(1,128)S(6)}', space=smem, size = 0x200, scoped, tag = 'scoped memory for soft_q_forward.1']
  %s0 = inlined_call_operand.vmem [shape: f32[8,16], index: 0, kind: input, shape index: {}]
  %s1 = inlined_call_operand.vmem [shape: f32[8,8], index: 1, kind: input, shape index: {}]
  %s2 = inlined_call_operand.vmem [shape: bf16[16,256], index: 2, kind: input, shape index: {}]
  %s3 = inlined_call_operand.vmem [shape: bf16[8,256], index: 3, kind: input, shape index: {}]
  %s4 = inlined_call_operand.vmem [shape: f32[1,256], index: 4, kind: input, shape index: {}]
  %s5 = inlined_call_operand.hbm [shape: bf16[256,256], index: 5, kind: input, shape index: {}]
  %s6 = inlined_call_operand.vmem [shape: f32[1,256], index: 6, kind: input, shape index: {}]
  %s7 = inlined_call_operand.vmem [shape: bf16[1,256], index: 7, kind: input, shape index: {}]
  %s8 = inlined_call_operand.<no memory space> [shape: f32[1,1], index: 8, kind: input, shape index: {}]
  %s9 = inlined_call_operand.vmem [shape: f32[8,1], index: 9, kind: output, shape index: {}]
  %s10 = sld [smem:[#allocation0]]
  $region50: #{soft_q_forward.1} parent=0
    _
  %s12 = ssub.s32 1, %s10
  %s13 = scalar_select 0, %s12, %s10
  %14 = sst [smem:[#allocation2]] %s8
  $region1: #{soft_q_forward.1} parent=0
    #allocation3 [shape = 'u8[131072]{0}', space=vmem, size = 0x20000, scoped, tag = 'input window, operand 5, single buffered']
    #allocation4 [shape = 's32[1]{0}', space=sflag, size = 0x4, scoped, tag = 'scoped memory for soft_q_forward.1']
    %15 = vsyncpa [#allocation4], 0
    // Predicated region
    $region2: #{soft_q_forward.1} parent=1 // pred_check
      _
    $region3: #{soft_q_forward.1} parent=1 // pred_check_branch
      %17 = sbr.rel (0) target = $region5
    $region4: #{soft_q_forward.1} parent=1 // pred_region
      _
    $region5: #{soft_q_forward.1} parent=1 // pred_fallthru
      _
    // Predicated region
    $region6: #{soft_q_forward.1} parent=1 // pred_check
      _
    $region7: #{soft_q_forward.1} parent=1 // pred_check_branch
      %19 = sbr.rel (0) target = $region9
    $region8: #{soft_q_forward.1} parent=1 // pred_region
      _
    $region9: #{soft_q_forward.1} parent=1 // pred_fallthru
      _
    // Predicated region
    $region10: #{soft_q_forward.1} parent=1 // pred_check
      _
    $region11: #{soft_q_forward.1} parent=1 // pred_check_branch
      %21 = sbr.rel (0) target = $region13
    $region12: #{soft_q_forward.1} parent=1 // pred_region
      _
    $region13: #{soft_q_forward.1} parent=1 // pred_fallthru
      _
    // Predicated region
    $region14: #{soft_q_forward.1} parent=1 // pred_check
      _
    $region15: #{soft_q_forward.1} parent=1 // pred_check_branch
      %23 = sbr.rel (0) target = $region17
    $region16: #{soft_q_forward.1} parent=1 // pred_region
      _
    $region17: #{soft_q_forward.1} parent=1 // pred_fallthru
      _
    // Predicated region
    $region18: #{soft_q_forward.1} parent=1 // pred_check
      _
    $region19: #{soft_q_forward.1} parent=1 // pred_check_branch
      %25 = sbr.rel (0) target = $region21
    $region20: #{soft_q_forward.1} parent=1 // pred_region
      _
    $region21: #{soft_q_forward.1} parent=1 // pred_fallthru
      _
    // Predicated region
    $region22: #{soft_q_forward.1} parent=1 // pred_check
      _
    $region23: #{soft_q_forward.1} parent=1 // pred_check_branch
      %27 = sbr.rel (0) target = $region25
    $region24: #{soft_q_forward.1} parent=1 // pred_region
      %s29 = ssub.s32 4096, 4096
      %30 = vsyncadd [#allocation4], %s29
      %s31 = sshll.u32 [#allocation3], 4
      %s32 = int_to_ptr.vmem [resolvable:$true] %s31
      %37 = dma.hbm_to_vmem [thread:$0]  %s5, 4096, %s32, [#allocation4], 128, 128, 8
    $region25: #{soft_q_forward.1} parent=1 // pred_fallthru
      _
    // Predicated region
    $region26: #{soft_q_forward.1} parent=1 // pred_check
      _
    $region27: #{soft_q_forward.1} parent=1 // pred_check_branch
      %39 = sbr.rel (0) target = $region29
    $region28: #{soft_q_forward.1} parent=1 // pred_region
      _
    $region29: #{soft_q_forward.1} parent=1 // pred_fallthru
      _
    // Predicated region
    $region30: #{soft_q_forward.1} parent=1 // pred_check
      _
    $region31: #{soft_q_forward.1} parent=1 // pred_check_branch
      %41 = sbr.rel (0) target = $region33
    $region32: #{soft_q_forward.1} parent=1 // pred_region
      _
    $region33: #{soft_q_forward.1} parent=1 // pred_fallthru
      _
    // Predicated region
    $region34: #{soft_q_forward.1} parent=1 // pred_check
      _
    $region35: #{soft_q_forward.1} parent=1 // pred_check_branch
      %43 = sbr.rel (0) target = $region37
    $region36: #{soft_q_forward.1} parent=1 // pred_region
      _
    $region37: #{soft_q_forward.1} parent=1 // pred_fallthru
      _
    // Predicated region
    $region38: #{soft_q_forward.1} parent=1 // pred_check
      _
    $region39: #{soft_q_forward.1} parent=1 // pred_check_branch
      %45 = sbr.rel (0) target = $region41
    $region40: #{soft_q_forward.1} parent=1 // pred_region
      %46 = dma.done [#allocation4], 4096
    $region41: #{soft_q_forward.1} parent=1 // pred_fallthru
      _
    %v48 = vld [vmem:[%s0] sm:$0xff]
    %v49 = vpack.c.bf16 %v48, %v48
    %v50 = vld [vmem:[%s1] sm:$0xff]
    %v51 = vpack.c.bf16 %v50, %v50
    %v52 = vld [vmem:[%s2] sm:$0xff]
    %v53 = vld [vmem:[%s2 + $0x8] sm:$0xff]
    %v54 = vld [vmem:[%s3] sm:$0xff]
    %v56 = vunpack.c.l.b16 %v54
    %v57 = vunpack.c.h.b16 %v54
    %v58 = vpack.c.b16 %v56, %v56
    %v59 = vpack.c.b16 %v57, %v57
    %vm60 = vcmask 64512
    %v62 = vsel %vm60, %v51, 0
    %vm64 = vcmask 1043456
    %v66 = vsel %vm64, %v58, 0
    %v69 = vsel %vm64, %v59, 0
    %71 = vmatprep.subr.bf16.mxu0 %v69
    %72 = vmatpush1.bf16.msra.mxu0 %v66
    %73 = vmatprep.subr.bf16.mxu0 0
    %74 = vmatpush1.bf16.msra.mxu0 0
    %75 = vmatprep.subr.bf16.mxu0 0
    %76 = vmatpush1.bf16.msra.mxu0 0
    %77 = vmatprep.subr.bf16.mxu0 0
    %78 = vmatpush1.bf16.msra.mxu0 0
    %79 = vmatprep.subr.bf16.mxu0 0
    %80 = vmatpush1.bf16.msra.mxu0 0
    %81 = vmatprep.subr.bf16.mxu0 0
    %82 = vmatpush1.bf16.msra.mxu0 0
    %83 = vmatprep.subr.bf16.mxu0 0
    %84 = vmatpush1.bf16.msra.mxu0 0
    %85 = vmatprep.subr.bf16.mxu0 0
    %86 = vmatpush1.bf16.msra.mxu0 0
    %87 = vmatprep.subr.bf16.mxu0 0
    %88 = vmatpush1.bf16.msra.mxu0 0
    %89 = vmatprep.subr.bf16.mxu0 0
    %90 = vmatpush1.bf16.msra.mxu0 0
    %91 = vmatprep.subr.bf16.mxu0 0
    %92 = vmatpush1.bf16.msra.mxu0 0
    %93 = vmatprep.subr.bf16.mxu0 0
    %94 = vmatpush1.bf16.msra.mxu0 0
    %95 = vmatprep.subr.bf16.mxu0 0
    %96 = vmatpush1.bf16.msra.mxu0 0
    %97 = vmatprep.subr.bf16.mxu0 0
    %98 = vmatpush1.bf16.msra.mxu0 0
    %99 = vmatprep.subr.bf16.mxu0 0
    %100 = vmatpush1.bf16.msra.mxu0 0
    %101 = vmatprep.subr.bf16.mxu0 0
    %102 = vmatpush1.bf16.msra.mxu0 0
    %103 = vmatprep.mubr.bf16.mxu0 0
    %104 = vmatmul.mubr.bf16.gmra.mrb[0].mxu0 %v62
    %v105 = vpop.f32.mrb[0].mxu0
    %v106 = vadd.f32 0.0, %v105
    %v107 = vpop.f32.mrb[0].mxu0
    %v108 = vadd.f32 0.0, %v107
    %v109 = vpop.f32.mrb[0].mxu0
    %v110 = vpop.f32.mrb[0].mxu0
    %111 = vdwg.mxu0
    %v114 = vunpack.c.l.b16 %v52
    %v115 = vunpack.c.h.b16 %v52
    %v116 = vunpack.c.l.b16 %v53
    %v117 = vunpack.c.h.b16 %v53
    %v118 = vpack.c.b16 %v116, %v114
    %v119 = vpack.c.b16 %v117, %v115
    %vm122 = vcmask 130048
    %v124 = vsel %vm122, %v49, 0
    %126 = vmatprep.subr.bf16.mxu0 %v119
    %127 = vmatpush1.bf16.msra.mxu0 %v118
    %128 = vmatprep.subr.bf16.mxu0 0
    %129 = vmatpush1.bf16.msra.mxu0 0
    %130 = vmatprep.subr.bf16.mxu0 0
    %131 = vmatpush1.bf16.msra.mxu0 0
    %132 = vmatprep.subr.bf16.mxu0 0
    %133 = vmatpush1.bf16.msra.mxu0 0
    %134 = vmatprep.subr.bf16.mxu0 0
    %135 = vmatpush1.bf16.msra.mxu0 0
    %136 = vmatprep.subr.bf16.mxu0 0
    %137 = vmatpush1.bf16.msra.mxu0 0
    %138 = vmatprep.subr.bf16.mxu0 0
    %139 = vmatpush1.bf16.msra.mxu0 0
    %140 = vmatprep.subr.bf16.mxu0 0
    %141 = vmatpush1.bf16.msra.mxu0 0
    %142 = vmatprep.subr.bf16.mxu0 0
    %143 = vmatpush1.bf16.msra.mxu0 0
    %144 = vmatprep.subr.bf16.mxu0 0
    %145 = vmatpush1.bf16.msra.mxu0 0
    %146 = vmatprep.subr.bf16.mxu0 0
    %147 = vmatpush1.bf16.msra.mxu0 0
    %148 = vmatprep.subr.bf16.mxu0 0
    %149 = vmatpush1.bf16.msra.mxu0 0
    %150 = vmatprep.subr.bf16.mxu0 0
    %151 = vmatpush1.bf16.msra.mxu0 0
    %152 = vmatprep.subr.bf16.mxu0 0
    %153 = vmatpush1.bf16.msra.mxu0 0
    %154 = vmatprep.subr.bf16.mxu0 0
    %155 = vmatpush1.bf16.msra.mxu0 0
    %156 = vmatprep.subr.bf16.mxu0 0
    %157 = vmatpush1.bf16.msra.mxu0 0
    %158 = vmatprep.mubr.bf16.mxu0 0
    %159 = vmatmul.mubr.bf16.gmra.mrb[0].mxu0 %v124
    %v160 = vpop.f32.mrb[0].mxu0
    %v161 = vadd.f32 %v106, %v160
    %v162 = vpop.f32.mrb[0].mxu0
    %v163 = vadd.f32 %v108, %v162
    %v164 = vpop.f32.mrb[0].mxu0
    %v165 = vpop.f32.mrb[0].mxu0
    %166 = vdwg.mxu0
    %v167 = vld [vmem:[%s4] sm:$0x3]
    %v169 = vlaneseq
    %v170 = vshrl.u32 %v169, 7
    %v171 = vsub.s32 0, %v170
    %v172 = vrot.slane %v167, %v171
    %v173 = vlaneseq
    %v174 = vshrl.u32 %v173, 7
    %v175 = vsub.s32 1, %v174
    %v176 = vrot.slane %v167, %v175
    %v179 = vadd.f32 %v161, %v172
    %v180 = vadd.f32 %v163, %v176
    %v181 = vmax.f32 %v179, 0.0
    %v182 = vmax.f32 %v180, 0.0
    %v183 = vpack.c.bf16 %v181, %v181
    %v184 = vpack.c.bf16 %v182, %v182
    %v185 = vld [vmem:[#allocation3] sm:$0xff]
    %v186 = vld [vmem:[#allocation3 + $0x8] sm:$0xff]
    %v187 = vld [vmem:[#allocation3 + $0x10] sm:$0xff]
    %v188 = vld [vmem:[#allocation3 + $0x18] sm:$0xff]
    %v189 = vld [vmem:[#allocation3 + $0x20] sm:$0xff]
    %v190 = vld [vmem:[#allocation3 + $0x28] sm:$0xff]
    %v191 = vld [vmem:[#allocation3 + $0x30] sm:$0xff]
    %v192 = vld [vmem:[#allocation3 + $0x38] sm:$0xff]
    %v193 = vld [vmem:[#allocation3 + $0x40] sm:$0xff]
    %v194 = vld [vmem:[#allocation3 + $0x48] sm:$0xff]
    %v195 = vld [vmem:[#allocation3 + $0x50] sm:$0xff]
    %v196 = vld [vmem:[#allocation3 + $0x58] sm:$0xff]
    %v197 = vld [vmem:[#allocation3 + $0x60] sm:$0xff]
    %v198 = vld [vmem:[#allocation3 + $0x68] sm:$0xff]
    %v199 = vld [vmem:[#allocation3 + $0x70] sm:$0xff]
    %v200 = vld [vmem:[#allocation3 + $0x78] sm:$0xff]
    %v201 = vld [vmem:[#allocation3 + $0x80] sm:$0xff]
    %v202 = vld [vmem:[#allocation3 + $0x88] sm:$0xff]
    %v203 = vld [vmem:[#allocation3 + $0x90] sm:$0xff]
    %v204 = vld [vmem:[#allocation3 + $0x98] sm:$0xff]
    %v205 = vld [vmem:[#allocation3 + $0xa0] sm:$0xff]
    %v206 = vld [vmem:[#allocation3 + $0xa8] sm:$0xff]
    %v207 = vld [vmem:[#allocation3 + $0xb0] sm:$0xff]
    %v208 = vld [vmem:[#allocation3 + $0xb8] sm:$0xff]
    %v209 = vld [vmem:[#allocation3 + $0xc0] sm:$0xff]
    %v210 = vld [vmem:[#allocation3 + $0xc8] sm:$0xff]
    %v211 = vld [vmem:[#allocation3 + $0xd0] sm:$0xff]
    %v212 = vld [vmem:[#allocation3 + $0xd8] sm:$0xff]
    %v213 = vld [vmem:[#allocation3 + $0xe0] sm:$0xff]
    %v214 = vld [vmem:[#allocation3 + $0xe8] sm:$0xff]
    %v215 = vld [vmem:[#allocation3 + $0xf0] sm:$0xff]
    %v216 = vld [vmem:[#allocation3 + $0xf8] sm:$0xff]
    %v217 = vld [vmem:[%s6] sm:$0x3]
    %v219 = vlaneseq
    %v220 = vshrl.u32 %v219, 7
    %v221 = vsub.s32 0, %v220
    %v222 = vrot.slane %v217, %v221
    %v223 = vlaneseq
    %v224 = vshrl.u32 %v223, 7
    %v225 = vsub.s32 1, %v224
    %v226 = vrot.slane %v217, %v225
    %v261 = vunpack.c.l.b16 %v185
    %v262 = vunpack.c.h.b16 %v185
    %v263 = vunpack.c.l.b16 %v186
    %v264 = vunpack.c.h.b16 %v186
    %v265 = vunpack.c.l.b16 %v187
    %v266 = vunpack.c.h.b16 %v187
    %v267 = vunpack.c.l.b16 %v188
    %v268 = vunpack.c.h.b16 %v188
    %v269 = vunpack.c.l.b16 %v189
    %v270 = vunpack.c.h.b16 %v189
    %v271 = vunpack.c.l.b16 %v190
    %v272 = vunpack.c.h.b16 %v190
    %v273 = vunpack.c.l.b16 %v191
    %v274 = vunpack.c.h.b16 %v191
    %v275 = vunpack.c.l.b16 %v192
    %v276 = vunpack.c.h.b16 %v192
    %v277 = vunpack.c.l.b16 %v193
    %v278 = vunpack.c.h.b16 %v193
    %v279 = vunpack.c.l.b16 %v194
    %v280 = vunpack.c.h.b16 %v194
    %v281 = vunpack.c.l.b16 %v195
    %v282 = vunpack.c.h.b16 %v195
    %v283 = vunpack.c.l.b16 %v196
    %v284 = vunpack.c.h.b16 %v196
    %v285 = vunpack.c.l.b16 %v197
    %v286 = vunpack.c.h.b16 %v197
    %v287 = vunpack.c.l.b16 %v198
    %v288 = vunpack.c.h.b16 %v198
    %v289 = vunpack.c.l.b16 %v199
    %v290 = vunpack.c.h.b16 %v199
    %v291 = vunpack.c.l.b16 %v200
    %v292 = vunpack.c.h.b16 %v200
    %v293 = vunpack.c.l.b16 %v201
    %v294 = vunpack.c.h.b16 %v201
    %v295 = vunpack.c.l.b16 %v202
    %v296 = vunpack.c.h.b16 %v202
    %v297 = vunpack.c.l.b16 %v203
    %v298 = vunpack.c.h.b16 %v203
    %v299 = vunpack.c.l.b16 %v204
    %v300 = vunpack.c.h.b16 %v204
    %v301 = vunpack.c.l.b16 %v205
    %v302 = vunpack.c.h.b16 %v205
    %v303 = vunpack.c.l.b16 %v206
    %v304 = vunpack.c.h.b16 %v206
    %v305 = vunpack.c.l.b16 %v207
    %v306 = vunpack.c.h.b16 %v207
    %v307 = vunpack.c.l.b16 %v208
    %v308 = vunpack.c.h.b16 %v208
    %v309 = vunpack.c.l.b16 %v209
    %v310 = vunpack.c.h.b16 %v209
    %v311 = vunpack.c.l.b16 %v210
    %v312 = vunpack.c.h.b16 %v210
    %v313 = vunpack.c.l.b16 %v211
    %v314 = vunpack.c.h.b16 %v211
    %v315 = vunpack.c.l.b16 %v212
    %v316 = vunpack.c.h.b16 %v212
    %v317 = vunpack.c.l.b16 %v213
    %v318 = vunpack.c.h.b16 %v213
    %v319 = vunpack.c.l.b16 %v214
    %v320 = vunpack.c.h.b16 %v214
    %v321 = vunpack.c.l.b16 %v215
    %v322 = vunpack.c.h.b16 %v215
    %v323 = vunpack.c.l.b16 %v216
    %v324 = vunpack.c.h.b16 %v216
    %v325 = vpack.c.b16 %v263, %v261
    %v326 = vpack.c.b16 %v264, %v262
    %v327 = vpack.c.b16 %v267, %v265
    %v328 = vpack.c.b16 %v268, %v266
    %v329 = vpack.c.b16 %v271, %v269
    %v330 = vpack.c.b16 %v272, %v270
    %v331 = vpack.c.b16 %v275, %v273
    %v332 = vpack.c.b16 %v276, %v274
    %v333 = vpack.c.b16 %v279, %v277
    %v334 = vpack.c.b16 %v280, %v278
    %v335 = vpack.c.b16 %v283, %v281
    %v336 = vpack.c.b16 %v284, %v282
    %v337 = vpack.c.b16 %v287, %v285
    %v338 = vpack.c.b16 %v288, %v286
    %v339 = vpack.c.b16 %v291, %v289
    %v340 = vpack.c.b16 %v292, %v290
    %v341 = vpack.c.b16 %v295, %v293
    %v342 = vpack.c.b16 %v296, %v294
    %v343 = vpack.c.b16 %v299, %v297
    %v344 = vpack.c.b16 %v300, %v298
    %v345 = vpack.c.b16 %v303, %v301
    %v346 = vpack.c.b16 %v304, %v302
    %v347 = vpack.c.b16 %v307, %v305
    %v348 = vpack.c.b16 %v308, %v306
    %v349 = vpack.c.b16 %v311, %v309
    %v350 = vpack.c.b16 %v312, %v310
    %v351 = vpack.c.b16 %v315, %v313
    %v352 = vpack.c.b16 %v316, %v314
    %v353 = vpack.c.b16 %v319, %v317
    %v354 = vpack.c.b16 %v320, %v318
    %v355 = vpack.c.b16 %v323, %v321
    %v356 = vpack.c.b16 %v324, %v322
    %389 = vmatprep.subr.bf16.mxu0 %v326
    %390 = vmatpush1.bf16.msra.mxu0 %v325
    %391 = vmatprep.subr.bf16.mxu0 %v328
    %392 = vmatpush1.bf16.msra.mxu0 %v327
    %393 = vmatprep.subr.bf16.mxu0 %v330
    %394 = vmatpush1.bf16.msra.mxu0 %v329
    %395 = vmatprep.subr.bf16.mxu0 %v332
    %396 = vmatpush1.bf16.msra.mxu0 %v331
    %397 = vmatprep.subr.bf16.mxu0 %v334
    %398 = vmatpush1.bf16.msra.mxu0 %v333
    %399 = vmatprep.subr.bf16.mxu0 %v336
    %400 = vmatpush1.bf16.msra.mxu0 %v335
    %401 = vmatprep.subr.bf16.mxu0 %v338
    %402 = vmatpush1.bf16.msra.mxu0 %v337
    %403 = vmatprep.subr.bf16.mxu0 %v340
    %404 = vmatpush1.bf16.msra.mxu0 %v339
    %405 = vmatprep.subr.bf16.mxu0 %v342
    %406 = vmatpush1.bf16.msra.mxu0 %v341
    %407 = vmatprep.subr.bf16.mxu0 %v344
    %408 = vmatpush1.bf16.msra.mxu0 %v343
    %409 = vmatprep.subr.bf16.mxu0 %v346
    %410 = vmatpush1.bf16.msra.mxu0 %v345
    %411 = vmatprep.subr.bf16.mxu0 %v348
    %412 = vmatpush1.bf16.msra.mxu0 %v347
    %413 = vmatprep.subr.bf16.mxu0 %v350
    %414 = vmatpush1.bf16.msra.mxu0 %v349
    %415 = vmatprep.subr.bf16.mxu0 %v352
    %416 = vmatpush1.bf16.msra.mxu0 %v351
    %417 = vmatprep.subr.bf16.mxu0 %v354
    %418 = vmatpush1.bf16.msra.mxu0 %v353
    %419 = vmatprep.subr.bf16.mxu0 %v356
    %420 = vmatpush1.bf16.msra.mxu0 %v355
    %421 = vmatprep.mubr.bf16.mxu0 %v184
    %422 = vmatmul.mubr.bf16.gmra.mrb[0].mxu0 %v183
    %v423 = vpop.f32.mrb[0].mxu0
    %v424 = vadd.f32 %v222, %v423
    %v425 = vpop.f32.mrb[0].mxu0
    %v426 = vadd.f32 %v226, %v425
    %v427 = vpop.f32.mrb[0].mxu0
    %v428 = vpop.f32.mrb[0].mxu0
    %429 = vdwg.mxu0
    %v430 = vmax.f32 %v424, 0.0
    %v431 = vmax.f32 %v426, 0.0
    %v432 = vld [vmem:[%s7] sm:$0x3]
    %v433 = vunpack.c.l.bf16 %v432
    %v435 = vlaneseq
    %v436 = vshrl.u32 %v435, 7
    %v437 = vsub.s32 0, %v436
    %v438 = vrot.slane %v433, %v437
    %v439 = vlaneseq
    %v440 = vshrl.u32 %v439, 7
    %v441 = vsub.s32 2, %v440
    %v442 = vrot.slane %v433, %v441
    %v445 = vlaneseq
    %v446 = vshrl.u32 %v445, 7
    %v447 = vsub.s32 0, %v446
    %v448 = vrot.slane %v438, %v447
    %v449 = vlaneseq
    %v450 = vshrl.u32 %v449, 7
    %v451 = vsub.s32 0, %v450
    %v452 = vrot.slane %v442, %v451
    %v453 = vmul.f32 %v430, %v448
    %v454 = vmul.f32 %v431, %v452
    %v455 = vadd.f32 %v453, %v454
    %456 = vadd.xlane.f32.xlu0 %v455
    %v457 = vpop.xlane.xlu0 %456
    %s458 = sld [smem:[#allocation2]]
    %v459 = vstv %s458
    %v460 = vadd.f32 %v457, %v459
    %vm461 = vcmask 7168
    %462 = vst.msk [vmem:[%s9] sm:$0xff] %vm461, %v460
    // Predicated region
    $region42: #{soft_q_forward.1} parent=1 // pred_check
      _
    $region43: #{soft_q_forward.1} parent=1 // pred_check_branch
      %464 = sbr.rel (0) target = $region45
    $region44: #{soft_q_forward.1} parent=1 // pred_region
      _
    $region45: #{soft_q_forward.1} parent=1 // pred_fallthru
      _
    // Predicated region
    $region46: #{soft_q_forward.1} parent=1 // pred_check
      _
    $region47: #{soft_q_forward.1} parent=1 // pred_check_branch
      %466 = sbr.rel (0) target = $region49
    $region48: #{soft_q_forward.1} parent=1 // pred_region
      _
    $region49: #{soft_q_forward.1} parent=1 // pred_fallthru
      _
    %467 = vsyncpa [#allocation4], 1

</llo_original>
